<compile_context>
chip_gen: v5e
topology: v5e:2x2
jax: 0.10.0
libtpu: 0.0.40
codegen_flags: <defaults>
</compile_context>

<pallas_src>
import jax
import jax.numpy as jnp
from jax import lax
from jax.experimental import pallas as pl
from jax.experimental.pallas import tpu as pltpu


def _round_up(x, m):
    return ((x + m - 1) // m) * m


def _choose_tm(n):
    # Cap the row tile at 256 so ~4 live (TM, N) f32 temporaries stay well
    # under v7x's 64 MiB VMEM; multiples of 128 keep v5e stores unmasked.
    if n >= 256:
        return 256
    if n >= 128:
        return 128
    return _round_up(max(n, 8), 8)


def ppgml_ms_loss_kernel(fparams_ref, iparams_ref, xrow_ref, xfull_ref,
                         labcol_ref, labrow_ref, out_ref):
    i = pl.program_id(0)
    TM = xrow_ref.shape[0]
    Npad = xfull_ref.shape[0]

    ref_th    = fparams_ref[0]   # PPGML data-dependent threshold
    epsilon   = fparams_ref[1]
    scale_pos = fparams_ref[2]
    scale_neg = fparams_ref[3]
    n_true    = iparams_ref[0]   # un-padded batch size

    # ---- pairwise cosine similarity slab (TM, Npad) on the MXU -------------
    # RHS contracted on its last dim -> Mosaic feeds it transposed internally;
    # no explicit X.T / XLU relayout.  bf16 inputs, f32 accumulation.
    sim = lax.dot_general(
        xrow_ref[...], xfull_ref[...],
        dimension_numbers=(((1,), (1,)), ((), ())),
        preferred_element_type=jnp.float32)

    lab_row = labcol_ref[...]            # (TM, 1)   int32 (anchor labels)
    lab_col = labrow_ref[...]            # (1, Npad) int32 (candidate labels)
    same = lab_row == lab_col            # (TM, Npad)

    # Self / padding masks: one full-size iota + a tiny (TM, 1) row index.
    col = lax.broadcasted_iota(jnp.int32, (TM, Npad), 1)
    row_global = i * TM + lax.broadcasted_iota(jnp.int32, (TM, 1), 0)
    not_self  = col != row_global
    col_valid = col < n_true
    row_valid = row_global < n_true      # (TM, 1)

    pos_mask = same & not_self & col_valid
    neg_mask = jnp.logical_not(same) & col_valid

    NEG_INF = jnp.float32(-1e30)
    POS_INF = jnp.float32(1e30)

    # ---- MultiSimilarityMiner(epsilon) --------------------------------------
    hardest_neg = jnp.max(jnp.where(neg_mask, sim, NEG_INF), axis=1, keepdims=True)
    hardest_pos = jnp.min(jnp.where(pos_mask, sim, POS_INF), axis=1, keepdims=True)
    mined_pos = pos_mask & (sim < hardest_neg + epsilon)
    mined_neg = neg_mask & (sim > hardest_pos - epsilon)

    # ---- MultiSimilarityLoss(scale_pos, scale_neg, thresh=ref) --------------
    # pos/neg branches are disjoint -> pick the scale with one where and
    # evaluate exp ONCE per element (EUP is the saturating slot).
    scale = jnp.where(same, -scale_pos, scale_neg)
    arg = jnp.minimum(scale * (sim - ref_th), 80.0)   # overflow guard
    e = jnp.exp(arg)
    pos_sum = jnp.sum(jnp.where(mined_pos, e, 0.0), axis=1, keepdims=True)
    neg_sum = jnp.sum(jnp.where(mined_neg, e, 0.0), axis=1, keepdims=True)

    pos_loss = jnp.log1p(pos_sum) / scale_pos
    neg_loss = jnp.log1p(neg_sum) / scale_neg
    anchor_loss = jnp.where(row_valid, pos_loss + neg_loss, 0.0)   # (TM, 1)

    block_sum = jnp.sum(anchor_loss)
    block_cnt = jnp.sum((anchor_loss > 0.0).astype(jnp.float32))

    # Lane-dense per-block partials: sublane 0 = sum, sublane 1 = nonzero cnt.
    sub = lax.broadcasted_iota(jnp.int32, (2, 128), 0)
    tile = jnp.where(sub == 0, block_sum, block_cnt)
    out_ref[...] = tile[None, :, :]


def ppgml_ms_loss(embeddings, labels, *, offset=0.75, epsilon=0.1,
                  scale_pos=2.0, scale_neg=50.0):
    """embeddings: (N, D) float32 (raw), labels: (N,) int.  Returns scalar."""
    N, D = embeddings.shape
    embeddings = embeddings.astype(jnp.float32)

    # ---- PPGML reference threshold (scalar plumbing in the wrapper) --------
    # TODO(synk): the original feeds `center` through Isomap -> Linear(1,4) ->
    # Stiefel lifting (scipy Riccati solve) -> Kronecker -> torch.eig LDA ->
    # uniform rsample loops; that sklearn/scipy pipeline has no Pallas
    # equivalent and its expected output is `center`, used deterministically.
    center = jnp.abs(jnp.mean(embeddings)) + offset
    ref_th = jnp.clip(jnp.sqrt(center), 0.8, 1.5)

    # Cosine similarity (pml CosineSimilarity distance): normalize rows, then
    # zero-pad D to the 128-lane axis (padding does not change dot products).
    x_n = embeddings / jnp.maximum(
        jnp.linalg.norm(embeddings, axis=1, keepdims=True), 1e-12)

    TM = _choose_tm(N)
    n_pad = _round_up(N, TM)
    d_pad = _round_up(D, 128)
    num_blocks = n_pad // TM

    x_p = jnp.zeros((n_pad, d_pad), jnp.float32).at[:N, :D].set(x_n)
    x_bf = x_p.astype(jnp.bfloat16)          # bf16 MXU inputs, f32 accumulate

    lab = labels.astype(jnp.int32)
    lab_p = jnp.full((n_pad,), -1, jnp.int32).at[:N].set(lab)
    lab_col = lab_p.reshape(n_pad, 1)        # anchor-row labels
    lab_row = lab_p.reshape(1, n_pad)        # row-major copy: no in-kernel transpose

    fparams = jnp.stack([ref_th,
                         jnp.float32(epsilon),
                         jnp.float32(scale_pos),
                         jnp.float32(scale_neg)])
    iparams = jnp.array([N], dtype=jnp.int32)

    partials = pl.pallas_call(
        ppgml_ms_loss_kernel,
        out_shape=jax.ShapeDtypeStruct((num_blocks, 2, 128), jnp.float32),
        grid=(num_blocks,),
        in_specs=[
            pl.BlockSpec(memory_space=pltpu.MemorySpace.SMEM),   # fparams
            pl.BlockSpec(memory_space=pltpu.MemorySpace.SMEM),   # iparams
            pl.BlockSpec((TM, d_pad), lambda i: (i, 0)),         # row block
            pl.BlockSpec((n_pad, d_pad), lambda i: (0, 0)),      # full X (resident)
            pl.BlockSpec((TM, 1), lambda i: (i, 0)),             # labels (rows)
            pl.BlockSpec((1, n_pad), lambda i: (0, 0)),          # labels (cols)
        ],
        out_specs=pl.BlockSpec((1, 2, 128), lambda i: (i, 0, 0)),
        compiler_params=pltpu.CompilerParams(
            dimension_semantics=("parallel",),        # v7x: shard rows over 2 TCs
            vmem_limit_bytes=48 * 1024 * 1024),
        cost_estimate=pl.CostEstimate(
            flops=2 * n_pad * n_pad * d_pad,
            transcendentals=n_pad * n_pad,
            bytes_accessed=2 * n_pad * d_pad * 2 + 2 * n_pad * 4
                           + num_blocks * 2 * 128 * 4),
    )(fparams, iparams, x_bf, x_bf, lab_col, lab_row)

    total_sum = jnp.sum(partials[:, 0, 0])
    total_cnt = jnp.sum(partials[:, 1, 0])
    # AvgNonZeroReducer semantics: mean over anchors with a nonzero loss
    # (pytorch-metric-learning default); use `/ N` instead for a plain mean.
    loss = total_sum / jnp.maximum(total_cnt, 1.0)

    # TODO(synk): the original also subtracts 1e-10 * mean(LDA eigenvalues);
    # the eigendecomposition pipeline is untranslatable and the term is
    # numerically negligible, so it is dropped.
    return loss


if __name__ == "__main__":
    key = jax.random.PRNGKey(0)
    N, D = 8, 32  # batch of 8 embeddings, hidden dim 32

    embeddings = jax.random.normal(key, (N, D), dtype=jnp.float32)
    labels = jnp.array([0, 0, 1, 1, 2, 2, 3, 3], dtype=jnp.int32)

    loss = ppgml_ms_loss(embeddings, labels)
    jax.block_until_ready(loss)
    assert jnp.isfinite(loss)
    print("KERNEL_OK")
</pallas_src>

<mosaic_0001>
module attributes {stable_mosaic.version = 11 : i64} {
  func.func @ppgml_ms_loss_kernel(%arg0: i32, %arg1: memref<4xf32, #tpu.memory_space<smem>>, %arg2: memref<1xi32, #tpu.memory_space<smem>>, %arg3: memref<8x128xbf16, #tpu.memory_space<vmem>>, %arg4: memref<8x128xbf16, #tpu.memory_space<vmem>>, %arg5: memref<8x1xi32, #tpu.memory_space<vmem>>, %arg6: memref<1x8xi32, #tpu.memory_space<vmem>>, %arg7: memref<1x2x128xf32, #tpu.memory_space<vmem>>) attributes {dimension_semantics = [#tpu.dimension_semantics<parallel>], iteration_bounds = array<i64: 1>, scalar_prefetch = 0 : i64, scratch_operands = 0 : i64, tpu.core_type = #tpu.core_type<tc>, window_params = [{transform_indices = @transform_0, window_bounds = array<i64: 4>}, {transform_indices = @transform_1, window_bounds = array<i64: 1>}, {transform_indices = @transform_2, window_bounds = array<i64: 8, 128>}, {pipeline_mode = #tpu.pipeline_mode<synchronous>, transform_indices = @transform_3, window_bounds = array<i64: 8, 128>}, {transform_indices = @transform_4, window_bounds = array<i64: 8, 1>}, {pipeline_mode = #tpu.pipeline_mode<synchronous>, transform_indices = @transform_5, window_bounds = array<i64: 1, 8>}, {transform_indices = @transform_6, window_bounds = array<i64: 1, 2, 128>}]} {
    %c0 = arith.constant 0 : index
    %0 = memref.load %arg1[%c0] : memref<4xf32, #tpu.memory_space<smem>>
    %c1 = arith.constant 1 : index
    %1 = memref.load %arg1[%c1] : memref<4xf32, #tpu.memory_space<smem>>
    %c2 = arith.constant 2 : index
    %2 = memref.load %arg1[%c2] : memref<4xf32, #tpu.memory_space<smem>>
    %c3 = arith.constant 3 : index
    %3 = memref.load %arg1[%c3] : memref<4xf32, #tpu.memory_space<smem>>
    %c0_0 = arith.constant 0 : index
    %4 = memref.load %arg2[%c0_0] : memref<1xi32, #tpu.memory_space<smem>>
    %c0_1 = arith.constant 0 : index
    %c0_2 = arith.constant 0 : index
    %5 = vector.load %arg3[%c0_1, %c0_2] : memref<8x128xbf16, #tpu.memory_space<vmem>>, vector<8x128xbf16>
    %c0_3 = arith.constant 0 : index
    %c0_4 = arith.constant 0 : index
    %6 = vector.load %arg4[%c0_3, %c0_4] : memref<8x128xbf16, #tpu.memory_space<vmem>>, vector<8x128xbf16>
    %cst = arith.constant dense<0.000000e+00> : vector<8x8xf32>
    %7 = tpu.matmul %5, %6, %cst {dimension_numbers = #tpu.dot_dimension_numbers<[1], [1], [0], [0], [0, 0, 1, 0], [], []>} : vector<8x128xbf16>, vector<8x128xbf16>, vector<8x8xf32> -> vector<8x8xf32>
    %c0_5 = arith.constant 0 : index
    %c0_6 = arith.constant 0 : index
    %8 = vector.load %arg5[%c0_5, %c0_6] : memref<8x1xi32, #tpu.memory_space<vmem>>, vector<8x1xi32>
    %c0_7 = arith.constant 0 : index
    %c0_8 = arith.constant 0 : index
    %9 = vector.load %arg6[%c0_7, %c0_8] : memref<1x8xi32, #tpu.memory_space<vmem>>, vector<1x8xi32>
    %10 = vector.broadcast %8 : vector<8x1xi32> to vector<8x8xi32>
    %11 = vector.broadcast %9 : vector<1x8xi32> to vector<8x8xi32>
    %12 = arith.cmpi eq, %10, %11 : vector<8x8xi32>
    %13 = tpu.iota {dimensions = array<i32: 1>} : vector<8x8xi32>
    %c8_i32 = arith.constant 8 : i32
    %14 = arith.muli %arg0, %c8_i32 : i32
    %15 = tpu.iota {dimensions = array<i32: 0>} : vector<8x1xi32>
    %16 = vector.broadcast %14 : i32 to vector<8x1xi32>
    %17 = arith.addi %16, %15 : vector<8x1xi32>
    %18 = vector.broadcast %17 : vector<8x1xi32> to vector<8x8xi32>
    %19 = arith.cmpi ne, %13, %18 : vector<8x8xi32>
    %20 = vector.broadcast %4 : i32 to vector<8x8xi32>
    %21 = arith.cmpi slt, %13, %20 : vector<8x8xi32>
    %22 = vector.broadcast %4 : i32 to vector<8x1xi32>
    %23 = arith.cmpi slt, %17, %22 : vector<8x1xi32>
    %24 = arith.andi %12, %19 : vector<8x8xi1>
    %25 = arith.andi %24, %21 : vector<8x8xi1>
    %cst_9 = arith.constant dense<true> : vector<8x8xi1>
    %26 = arith.xori %12, %cst_9 : vector<8x8xi1>
    %27 = arith.andi %26, %21 : vector<8x8xi1>
    %cst_10 = arith.constant -1.000000e+30 : f32
    %28 = vector.broadcast %cst_10 : f32 to vector<8x8xf32>
    %29 = arith.select %27, %7, %28 : vector<8x8xi1>, vector<8x8xf32>
    %cst_11 = arith.constant dense<0xFF800000> : vector<8xf32>
    %30 = vector.multi_reduction <maximumf>, %29, %cst_11 [1] : vector<8x8xf32> to vector<8xf32>
    %31 = vector.shape_cast %30 : vector<8xf32> to vector<8x1xf32>
    %cst_12 = arith.constant 1.000000e+30 : f32
    %32 = vector.broadcast %cst_12 : f32 to vector<8x8xf32>
    %33 = arith.select %25, %7, %32 : vector<8x8xi1>, vector<8x8xf32>
    %cst_13 = arith.constant dense<0x7F800000> : vector<8xf32>
    %34 = vector.multi_reduction <minimumf>, %33, %cst_13 [1] : vector<8x8xf32> to vector<8xf32>
    %35 = vector.shape_cast %34 : vector<8xf32> to vector<8x1xf32>
    %36 = vector.broadcast %1 : f32 to vector<8x1xf32>
    %37 = arith.addf %31, %36 : vector<8x1xf32>
    %38 = vector.broadcast %37 : vector<8x1xf32> to vector<8x8xf32>
    %39 = arith.cmpf olt, %7, %38 : vector<8x8xf32>
    %40 = arith.andi %25, %39 : vector<8x8xi1>
    %41 = vector.broadcast %1 : f32 to vector<8x1xf32>
    %42 = arith.subf %35, %41 : vector<8x1xf32>
    %43 = vector.broadcast %42 : vector<8x1xf32> to vector<8x8xf32>
    %44 = arith.cmpf ogt, %7, %43 : vector<8x8xf32>
    %45 = arith.andi %27, %44 : vector<8x8xi1>
    %cst_14 = arith.constant 0.000000e+00 : f32
    %46 = arith.subf %cst_14, %2 : f32
    %47 = vector.broadcast %46 : f32 to vector<8x8xf32>
    %48 = vector.broadcast %3 : f32 to vector<8x8xf32>
    %49 = arith.select %12, %47, %48 : vector<8x8xi1>, vector<8x8xf32>
    %50 = vector.broadcast %0 : f32 to vector<8x8xf32>
    %51 = arith.subf %7, %50 : vector<8x8xf32>
    %52 = arith.mulf %49, %51 : vector<8x8xf32>
    %cst_15 = arith.constant 8.000000e+01 : f32
    %53 = vector.broadcast %cst_15 : f32 to vector<8x8xf32>
    %54 = arith.minimumf %52, %53 : vector<8x8xf32>
    %55 = math.exp %54 : vector<8x8xf32>
    %cst_16 = arith.constant 0.000000e+00 : f32
    %56 = vector.broadcast %cst_16 : f32 to vector<8x8xf32>
    %57 = arith.select %40, %55, %56 : vector<8x8xi1>, vector<8x8xf32>
    %cst_17 = arith.constant dense<0.000000e+00> : vector<8xf32>
    %58 = vector.multi_reduction <add>, %57, %cst_17 [1] : vector<8x8xf32> to vector<8xf32>
    %59 = vector.shape_cast %58 : vector<8xf32> to vector<8x1xf32>
    %cst_18 = arith.constant 0.000000e+00 : f32
    %60 = vector.broadcast %cst_18 : f32 to vector<8x8xf32>
    %61 = arith.select %45, %55, %60 : vector<8x8xi1>, vector<8x8xf32>
    %cst_19 = arith.constant dense<0.000000e+00> : vector<8xf32>
    %62 = vector.multi_reduction <add>, %61, %cst_19 [1] : vector<8x8xf32> to vector<8xf32>
    %63 = vector.shape_cast %62 : vector<8xf32> to vector<8x1xf32>
    %64 = math.log1p %59 : vector<8x1xf32>
    %65 = vector.broadcast %2 : f32 to vector<8x1xf32>
    %66 = arith.divf %64, %65 : vector<8x1xf32>
    %67 = math.log1p %63 : vector<8x1xf32>
    %68 = vector.broadcast %3 : f32 to vector<8x1xf32>
    %69 = arith.divf %67, %68 : vector<8x1xf32>
    %70 = arith.addf %66, %69 : vector<8x1xf32>
    %cst_20 = arith.constant 0.000000e+00 : f32
    %71 = vector.broadcast %cst_20 : f32 to vector<8x1xf32>
    %72 = arith.select %23, %70, %71 : vector<8x1xi1>, vector<8x1xf32>
    %73 = vector.shape_cast %72 : vector<8x1xf32> to vector<1x8x1xf32>
    %cst_21 = arith.constant dense<0.000000e+00> : vector<1xf32>
    %74 = vector.multi_reduction <add>, %73, %cst_21 [1, 2] : vector<1x8x1xf32> to vector<1xf32>
    %75 = vector.shape_cast %74 : vector<1xf32> to vector<1x1x1xf32>
    %76 = vector.extract %75[0, 0, 0] : f32 from vector<1x1x1xf32>
    %cst_22 = arith.constant 0.000000e+00 : f32
    %77 = vector.broadcast %cst_22 : f32 to vector<8x1xf32>
    %78 = arith.cmpf ogt, %72, %77 : vector<8x1xf32>
    %79 = arith.extui %78 : vector<8x1xi1> to vector<8x1xi32>
    %80 = arith.sitofp %79 : vector<8x1xi32> to vector<8x1xf32>
    %81 = vector.shape_cast %80 : vector<8x1xf32> to vector<1x8x1xf32>
    %cst_23 = arith.constant dense<0.000000e+00> : vector<1xf32>
    %82 = vector.multi_reduction <add>, %81, %cst_23 [1, 2] : vector<1x8x1xf32> to vector<1xf32>
    %83 = vector.shape_cast %82 : vector<1xf32> to vector<1x1x1xf32>
    %84 = vector.extract %83[0, 0, 0] : f32 from vector<1x1x1xf32>
    %85 = tpu.iota {dimensions = array<i32: 0>} : vector<2x128xi32>
    %c0_i32 = arith.constant 0 : i32
    %86 = vector.broadcast %c0_i32 : i32 to vector<2x128xi32>
    %87 = arith.cmpi eq, %85, %86 : vector<2x128xi32>
    %88 = vector.broadcast %76 : f32 to vector<2x128xf32>
    %89 = vector.broadcast %84 : f32 to vector<2x128xf32>
    %90 = arith.select %87, %88, %89 : vector<2x128xi1>, vector<2x128xf32>
    %91 = vector.shape_cast %90 : vector<2x128xf32> to vector<1x2x128xf32>
    %c0_24 = arith.constant 0 : index
    %c0_25 = arith.constant 0 : index
    %c0_26 = arith.constant 0 : index
    %92 = vector.load %arg7[%c0_24, %c0_25, %c0_26] : memref<1x2x128xf32, #tpu.memory_space<vmem>>, vector<1x2x128xf32>
    tpu.vector_store %arg7[%c0_24, %c0_25, %c0_26], %91 {strides = array<i32>} : memref<1x2x128xf32, #tpu.memory_space<vmem>>, vector<1x2x128xf32>,
    return
  }
  func.func @transform_0(%arg0: i32) -> i32 {
    %c0_i32 = arith.constant 0 : i32
    %c0_i32_0 = arith.constant 0 : i32
    return %c0_i32 : i32
  }
  func.func @transform_1(%arg0: i32) -> i32 {
    %c0_i32 = arith.constant 0 : i32
    %c0_i32_0 = arith.constant 0 : i32
    return %c0_i32 : i32
  }
  func.func @transform_2(%arg0: i32) -> (i32, i32) {
    %c0_i32 = arith.constant 0 : i32
    %c0_i32_0 = arith.constant 0 : i32
    return %arg0, %c0_i32 : i32, i32
  }
  func.func @transform_3(%arg0: i32) -> (i32, i32) {
    %c0_i32 = arith.constant 0 : i32
    %c0_i32_0 = arith.constant 0 : i32
    %c0_i32_1 = arith.constant 0 : i32
    return %c0_i32, %c0_i32_0 : i32, i32
  }
  func.func @transform_4(%arg0: i32) -> (i32, i32) {
    %c0_i32 = arith.constant 0 : i32
    %c0_i32_0 = arith.constant 0 : i32
    return %arg0, %c0_i32 : i32, i32
  }
  func.func @transform_5(%arg0: i32) -> (i32, i32) {
    %c0_i32 = arith.constant 0 : i32
    %c0_i32_0 = arith.constant 0 : i32
    %c0_i32_1 = arith.constant 0 : i32
    return %c0_i32, %c0_i32_0 : i32, i32
  }
  func.func @transform_6(%arg0: i32) -> (i32, i32, i32) {
    %c0_i32 = arith.constant 0 : i32
    %c0_i32_0 = arith.constant 0 : i32
    %c0_i32_1 = arith.constant 0 : i32
    return %arg0, %c0_i32, %c0_i32_0 : i32, i32, i32
  }
}

</mosaic_0001>

<llo_original>
// kernel: tpu_custom_call.1
$region0: #{tpu_custom_call.1}
  #allocation0 [shape = 'u32[]', space=smem, size = 0x4, offset = 0x4, fixed_abs, tag = 'smem constant byte address 0x4 - core index']
  #allocation1 [shape = 'u32[72,128]{1,0:T(1,128)}', space=vmem, size = 0x9000, scoped, tag = 'internal scratch']
  #allocation2 [shape = 's32[1]{0:T(128)S(6)}', space=smem, size = 0x200, scoped, tag = 'scoped memory for tpu_custom_call.1']
  %s0 = inlined_call_operand.vmem [shape: f32[4], index: 0, kind: input, shape index: {}]
  %s1 = inlined_call_operand.<no memory space> [shape: s32[1], index: 1, kind: input, shape index: {}]
  %s2 = inlined_call_operand.vmem [shape: bf16[8,128], index: 2, kind: input, shape index: {}]
  %s3 = inlined_call_operand.vmem [shape: bf16[8,128], index: 3, kind: input, shape index: {}]
  %s4 = inlined_call_operand.vmem [shape: s32[8,1], index: 4, kind: input, shape index: {}]
  %s5 = inlined_call_operand.vmem [shape: s32[1,8], index: 5, kind: input, shape index: {}]
  %s6 = inlined_call_operand.hbm [shape: f32[1,2,128], index: 6, kind: output, shape index: {}]
  %s7 = sld [smem:[#allocation0]]
  $region38: #{tpu_custom_call.1} parent=0
    _
  %s9 = ssub.s32 1, %s7
  %s10 = scalar_select 0, %s9, %s7
  %11 = sst [smem:[#allocation2]] %s1
  $region1: #{tpu_custom_call.1} parent=0
    #allocation3 [shape = 'u8[512]{0}', space=smem, size = 0x200, scoped, tag = 'input window, operand 0, single buffered']
    #allocation4 [shape = 's32[1]{0}', space=sflag, size = 0x4, scoped, tag = 'scoped memory for tpu_custom_call.1']
    #allocation5 [shape = 's32[1]{0}', space=sflag, size = 0x4, scoped, tag = 'scoped memory for tpu_custom_call.1']
    #allocation6 [shape = 'u8[1024]{0}', space=vmem, size = 0x400, scoped, tag = 'output window, operand 0, single buffered']
    %12 = vsyncpa [#allocation5], 0
    %13 = vsyncpa [#allocation4], 0
    // Predicated region
    $region2: #{tpu_custom_call.1} parent=1 // pred_check
      _
    $region3: #{tpu_custom_call.1} parent=1 // pred_check_branch
      %15 = sbr.rel (0) target = $region5
    $region4: #{tpu_custom_call.1} parent=1 // pred_region
      %17 = vsyncadd [#allocation5], 0
      %s19 = sshll.u32 %s0, 4
      %s20 = int_to_ptr.vmem [resolvable:$true] %s19
      %22 = dma.vmem_to_smem %s20, 16, [#allocation3], [#allocation5]
    $region5: #{tpu_custom_call.1} parent=1 // pred_fallthru
      _
    // Predicated region
    $region6: #{tpu_custom_call.1} parent=1 // pred_check
      _
    $region7: #{tpu_custom_call.1} parent=1 // pred_check_branch
      %24 = sbr.rel (0) target = $region9
    $region8: #{tpu_custom_call.1} parent=1 // pred_region
      _
    $region9: #{tpu_custom_call.1} parent=1 // pred_fallthru
      _
    // Predicated region
    $region10: #{tpu_custom_call.1} parent=1 // pred_check
      _
    $region11: #{tpu_custom_call.1} parent=1 // pred_check_branch
      %26 = sbr.rel (0) target = $region13
    $region12: #{tpu_custom_call.1} parent=1 // pred_region
      _
    $region13: #{tpu_custom_call.1} parent=1 // pred_fallthru
      _
    // Predicated region
    $region14: #{tpu_custom_call.1} parent=1 // pred_check
      _
    $region15: #{tpu_custom_call.1} parent=1 // pred_check_branch
      %28 = sbr.rel (0) target = $region17
    $region16: #{tpu_custom_call.1} parent=1 // pred_region
      _
    $region17: #{tpu_custom_call.1} parent=1 // pred_fallthru
      _
    // Predicated region
    $region18: #{tpu_custom_call.1} parent=1 // pred_check
      _
    $region19: #{tpu_custom_call.1} parent=1 // pred_check_branch
      %30 = sbr.rel (0) target = $region21
    $region20: #{tpu_custom_call.1} parent=1 // pred_region
      _
    $region21: #{tpu_custom_call.1} parent=1 // pred_fallthru
      _
    // Predicated region
    $region22: #{tpu_custom_call.1} parent=1 // pred_check
      _
    $region23: #{tpu_custom_call.1} parent=1 // pred_check_branch
      %32 = sbr.rel (0) target = $region25
    $region24: #{tpu_custom_call.1} parent=1 // pred_region
      _
    $region25: #{tpu_custom_call.1} parent=1 // pred_fallthru
      _
    // Predicated region
    $region26: #{tpu_custom_call.1} parent=1 // pred_check
      _
    $region27: #{tpu_custom_call.1} parent=1 // pred_check_branch
      %34 = sbr.rel (0) target = $region29
    $region28: #{tpu_custom_call.1} parent=1 // pred_region
      %36 = dma.done [#allocation5], 16
    $region29: #{tpu_custom_call.1} parent=1 // pred_fallthru
      _
    %37 = sfence
    %s39 = sld [smem:[#allocation3]]
    %s40 = sld [smem:[#allocation3 + $0x1]]
    %s41 = sld [smem:[#allocation3 + $0x2]]
    %s42 = sld [smem:[#allocation3 + $0x3]]
    %s43 = sld [smem:[#allocation2]]
    %v44 = vld [vmem:[%s2] sm:$0xf]
    %v45 = vld [vmem:[%s3] sm:$0xf]
    %46 = vmatpush.bf16.xpose.msra.mxu0 0
    %47 = vmatpush.bf16.xpose.msra.mxu0 0
    %48 = vmatpush.bf16.xpose.msra.mxu0 0
    %49 = vmatpush.bf16.xpose.msra.mxu0 0
    %50 = vmatpush.bf16.xpose.msra.mxu0 0
    %51 = vmatpush.bf16.xpose.msra.mxu0 0
    %52 = vmatpush.bf16.xpose.msra.mxu0 0
    %53 = vmatpush.bf16.xpose.msra.mxu0 %v45
    %54 = vmatmul.bf16.gmra.mxu0 %v44
    %v55 = vpop.f32.mrf.mxu0
    %v56 = vadd.f32 0.0, %v55
    %v57 = vpop.f32.mrf.mxu0
    %58 = vdwg.mxu0
    %v59 = vld [vmem:[%s4] sm:$0xff]
    %v60 = vld [vmem:[%s5] sm:$0x1]
    %61 = vset.pattern.permute.xlu0 0
    %62 = vperm.xlu0 %61, %v59
    %v63 = vpop.permute.xlu0 %62
    %v64 = vperm.slane %v60, 0
    %vm65 = vcmp.eq.s32.totalorder %v63, %v64
    %v66 = vlaneseq
    %v67 = vand.u32 %v66, 127
    %s68 = smul.u32 0, 8
    %v69 = vlaneseq
    %v70 = vshrl.u32 %v69, 7
    %v71 = vstv %s68
    %v72 = vadd.s32 %v71, %v70
    %vm73 = vcmp.ne.s32.totalorder %v67, %v72
    %v74 = vstv %s43
    %vm75 = vcmp.lt.s32.totalorder %v67, %v74
    %vm76 = vcmp.lt.s32.totalorder %v72, %v74
    %vm77 = vmand %vm65, %vm73
    %vm78 = vmand %vm77, %vm75
    %vm79 = vmxor %vm65, 1
    %vm80 = vmand %vm79, %vm75
    %v81 = vsel %vm80, %v56, -1e+30
    %vm82 = vcmask 64512
    %v83 = vsel %vm82, %v81, -inf
    %84 = vmax.xlane.f32.xlu0 %v83
    %v85 = vpop.xlane.xlu0 %84
    %v86 = vsel %vm78, %v56, 1e+30
    %v87 = vsel %vm82, %v86, inf
    %88 = vmin.xlane.f32.xlu0 %v87
    %v89 = vpop.xlane.xlu0 %88
    %v90 = vstv %s40
    %v91 = vadd.f32 %v85, %v90
    %vm92 = vcmp.lt.f32.partialorder %v56, %v91
    %vm93 = vmand %vm78, %vm92
    %v94 = vsub.f32 %v89, %v90
    %vm95 = vcmp.gt.f32.partialorder %v56, %v94
    %vm96 = vmand %vm80, %vm95
    %s97 = ssub.f32 0.0, %s41
    %v98 = vstv %s97
    %v99 = vstv %s42
    %v100 = vsel %vm65, %v98, %v99
    %v101 = vstv %s39
    %v102 = vsub.f32 %v56, %v101
    %v103 = vmul.f32 %v100, %v102
    %v104 = vmin.f32 %v103, 80.0
    %v105 = vmul.f32 %v104, 1.442695
    %v106 = vpow.pop %v105
    %v107 = vsel %vm93, %v106, 0.0
    %v108 = vsel %vm82, %v107, 0.0
    %109 = vadd.xlane.f32.xlu0 %v108
    %v110 = vpop.xlane.xlu0 %109
    %v111 = vsel %vm96, %v106, 0.0
    %v112 = vsel %vm82, %v111, 0.0
    %113 = vadd.xlane.f32.xlu0 %v112
    %v114 = vpop.xlane.xlu0 %113
    %v115 = vadd.f32 %v110, 1.0
    %v116 = vlog2.pop %v115
    %v117 = vmul.f32 %v116, 0.6931472
    %v118 = vmul.f32 -0.5, %v110
    %v119 = vadd.f32 %v118, 1.0
    %v120 = vmul.f32 %v119, %v110
    %v121 = vand.u32 2147483647, %v110
    %vm122 = vcmp.lt.f32.partialorder %v121, 0.0004427343
    %v123 = vsel %vm122, %v120, %v117
    %v124 = vstv %s41
    %v125 = vrcp.pop %v124
    %v126 = vmul.f32 %v124, %v125
    %v127 = vsub.f32 1.0, %v126
    %v128 = vmul.f32 %v125, %v127
    %v129 = vadd.f32 %v125, %v128
    %vm130 = vweird.f32 %v124
    %vm131 = vweird.f32 %v125
    %vm132 = vmor %vm130, %vm131
    %v133 = vsel %vm132, %v125, %v129
    %v134 = vand.u32 2147483647, %v124
    %vm135 = vcmp.eq.f32.partialorder %v134, 8.507059e+37
    %v136 = vand.u32 %v124, 2147483648
    %v137 = vor.u32 1.1754944e-38, %v136
    %v138 = vsel %vm135, %v137, %v133
    %v139 = vmul.f32 %v123, %v138
    %v140 = vadd.f32 %v114, 1.0
    %v141 = vlog2.pop %v140
    %v142 = vmul.f32 %v141, 0.6931472
    %v143 = vmul.f32 -0.5, %v114
    %v144 = vadd.f32 %v143, 1.0
    %v145 = vmul.f32 %v144, %v114
    %v146 = vand.u32 2147483647, %v114
    %vm147 = vcmp.lt.f32.partialorder %v146, 0.0004427343
    %v148 = vsel %vm147, %v145, %v142
    %v149 = vrcp.pop %v99
    %v150 = vmul.f32 %v99, %v149
    %v151 = vsub.f32 1.0, %v150
    %v152 = vmul.f32 %v149, %v151
    %v153 = vadd.f32 %v149, %v152
    %vm154 = vweird.f32 %v99
    %vm155 = vweird.f32 %v149
    %vm156 = vmor %vm154, %vm155
    %v157 = vsel %vm156, %v149, %v153
    %v158 = vand.u32 2147483647, %v99
    %vm159 = vcmp.eq.f32.partialorder %v158, 8.507059e+37
    %v160 = vand.u32 %v99, 2147483648
    %v161 = vor.u32 1.1754944e-38, %v160
    %v162 = vsel %vm159, %v161, %v157
    %v163 = vmul.f32 %v148, %v162
    %v164 = vadd.f32 %v139, %v163
    %v165 = vsel %vm76, %v164, 0.0
    %vm166 = vcmask 7168
    %v167 = vsel %vm166, %v165, 0.0
    %168 = vadd.xlane.f32.xlu0 %v167
    %v169 = vpop.xlane.xlu0 %168
    %v170 = vrot.slane %v169, 4
    %v171 = vadd.f32 %v169, %v170
    %v172 = vrot.slane %v171, 2
    %v173 = vadd.f32 %v171, %v172
    %v174 = vrot.slane %v173, 1
    %v175 = vadd.f32 %v173, %v174
    %s176 = vtos %v175
    %vm177 = vcmp.gt.f32.partialorder %v165, 0.0
    %v178 = vsel %vm177, 1, 0
    %v179 = vcvt.s32.f32 %v178
    %v180 = vsel %vm166, %v179, 0.0
    %181 = vadd.xlane.f32.xlu0 %v180
    %v182 = vpop.xlane.xlu0 %181
    %v183 = vrot.slane %v182, 4
    %v184 = vadd.f32 %v182, %v183
    %v185 = vrot.slane %v184, 2
    %v186 = vadd.f32 %v184, %v185
    %v187 = vrot.slane %v186, 1
    %v188 = vadd.f32 %v186, %v187
    %s189 = vtos %v188
    %vm190 = vcmp.eq.s32.totalorder %v70, 0
    %v191 = vstv %s176
    %v192 = vstv %s189
    %v193 = vsel %vm190, %v191, %v192
    %194 = vst [vmem:[#allocation6] sm:$0x3] %v193
    // Predicated region
    $region30: #{tpu_custom_call.1} parent=1 // pred_check
      _
    $region31: #{tpu_custom_call.1} parent=1 // pred_check_branch
      %196 = sbr.rel (0) target = $region33
    $region32: #{tpu_custom_call.1} parent=1 // pred_region
      %198 = vsyncadd [#allocation4], 0
      %s200 = sshll.u32 [#allocation6], 4
      %s201 = int_to_ptr.vmem [resolvable:$true] %s200
      %s202 = sshll.u32 %s6, 4
      %s203 = int_to_ptr.hbm [resolvable:$true] %s202
      %205 = dma.vmem_to_hbm [thread:$0]  %s201, 32, %s203, [#allocation4]
    $region33: #{tpu_custom_call.1} parent=1 // pred_fallthru
      _
    // Predicated region
    $region34: #{tpu_custom_call.1} parent=1 // pred_check
      _
    $region35: #{tpu_custom_call.1} parent=1 // pred_check_branch
      %207 = sbr.rel (0) target = $region37
    $region36: #{tpu_custom_call.1} parent=1 // pred_region
      %209 = dma.done [#allocation4], 32
    $region37: #{tpu_custom_call.1} parent=1 // pred_fallthru
      _
    %210 = vsyncpa [#allocation4], 1
    %211 = vsyncpa [#allocation5], 1

</llo_original>
